<compile_context>
chip_gen: v6e
topology: v6e:2x2x1
jax: 0.10.0
libtpu: 0.0.40
codegen_flags: <defaults>
</compile_context>

<pallas_src>
import functools

import jax
import jax.numpy as jnp
from jax.experimental import pallas as pl
from jax.experimental.pallas import tpu as pltpu


def _make_kernel(code_interactions: bool):
    def kernel(*refs):
        if code_interactions:
            (x_ref, We_ref, be_ref, fW1_ref, fb1_ref,
             fW1i_ref, ed_ref, ec_ref,
             Wo_h_ref, Wo_c_ref, bo_ref, out_ref) = refs
        else:
            (x_ref, We_ref, be_ref, fW1_ref, fb1_ref,
             Wo_h_ref, Wo_c_ref, bo_ref, out_ref) = refs
            fW1i_ref = ed_ref = ec_ref = None

        f32 = jnp.float32
        # Activations may be streamed bf16; weights and accumulation stay f32.
        x = x_ref[...].astype(f32)

        # Fused encoders: code = [drug_code | cell_code]  (block-diag We).
        code = jnp.maximum(
            jnp.dot(x, We_ref[...], preferred_element_type=f32) + be_ref[...], 0.0)

        # Forward network, first layer on the packed code.
        h = jnp.dot(code, fW1_ref[...], preferred_element_type=f32) + fb1_ref[...]
        if code_interactions:
            # inter[b, i*Cc + j] = d_code[b, i] * c_code[b, j], built lane-wise
            # with two expansion matmuls (zero rows for the "other" code block),
            # then ONE K = Cd*Cc matmul against the interaction rows of fW1.
            d_exp = jnp.dot(code, ed_ref[...], preferred_element_type=f32)
            c_exp = jnp.dot(code, ec_ref[...], preferred_element_type=f32)
            h = h + jnp.dot(d_exp * c_exp, fW1i_ref[...], preferred_element_type=f32)
        h = jnp.maximum(h, 0.0)

        # Single packed, lane-dense output store:
        #   lanes [0:OUT)                       -> prediction       (h @ fW2)
        #   lanes [OUT:OUT+Dd_out)              -> drug recon       (d_code @ dWd)
        #   lanes [OUT+Dd_out:OUT+Dd_out+Dc_out)-> cell recon       (c_code @ cWd)
        out_ref[...] = (jnp.dot(h, Wo_h_ref[...], preferred_element_type=f32)
                        + jnp.dot(code, Wo_c_ref[...], preferred_element_type=f32)
                        + bo_ref[...])

    return kernel


def rec_system_code_concatenation(drug_features, cell_line_features, params, *,
                                  code_interactions=True, tile_b=1024,
                                  stream_dtype=jnp.float32):
    """Fused forward pass. Returns (prediction, drug_recon, cell_recon)."""
    f32 = jnp.float32
    B, Dd_in = drug_features.shape
    _, Dc_in = cell_line_features.shape

    def row(b):  # accept 1-D (PyTorch convention) or (1, N) biases
        return jnp.asarray(b, f32).reshape(1, -1)

    dWe = jnp.asarray(params["dWe"], f32); dbe = row(params["dbe"])
    dWd = jnp.asarray(params["dWd"], f32); dbd = row(params["dbd"])
    cWe = jnp.asarray(params["cWe"], f32); cbe = row(params["cbe"])
    cWd = jnp.asarray(params["cWd"], f32); cbd = row(params["cbd"])
    fW1 = jnp.asarray(params["fW1"], f32); fb1 = row(params["fb1"])
    fW2 = jnp.asarray(params["fW2"], f32); fb2 = row(params["fb2"])

    Cd, Cc = dWe.shape[1], cWe.shape[1]
    Ctot = Cd + Cc
    Dd_out, Dc_out = dWd.shape[1], cWd.shape[1]
    H, OUT = fW1.shape[1], fW2.shape[1]
    concat_dim = Ctot + (Cd * Cc if code_interactions else 0)
    assert fW1.shape[0] == concat_dim, (fW1.shape, concat_dim)

    LANE = 128
    rup = lambda x, m: -(-x // m) * m

    # ---- packed input: [drug | cell], one HBM stream ------------------------
    Din = Dd_in + Dc_in
    x = jnp.concatenate([jnp.asarray(drug_features, f32),
                         jnp.asarray(cell_line_features, f32)], axis=1)

    # Batch tiling: big tiles amortize per-step overhead, but cap so the grid
    # has >= 2 steps (v7x megacore) whenever the batch allows it.
    sub = 16 if jnp.dtype(stream_dtype) == jnp.dtype(jnp.bfloat16) else 8
    tile = rup(max(1, min(int(tile_b), -(-B // 2))), sub)
    B_pad = rup(B, tile)
    grid = (B_pad // tile,)
    x_p = jnp.pad(x, ((0, B_pad - B), (0, 0))).astype(stream_dtype)

    # ---- fused (block-diagonal) encoder ------------------------------------
    We = jnp.block([[dWe, jnp.zeros((Dd_in, Cc), f32)],
                    [jnp.zeros((Dc_in, Cd), f32), cWe]])          # (Din, Ctot)
    be = jnp.concatenate([dbe, cbe], axis=1)                       # (1, Ctot)

    # ---- forward-network first layer (split in the wrapper, never in-kernel)
    fW1_dc = fW1[:Ctot]                                            # (Ctot, H)

    # ---- packed output weights: [pred | drug_rec | cell_rec] ----------------
    N_out = OUT + Dd_out + Dc_out
    N_pad = rup(N_out, LANE)                                       # lane-dense store
    Wo_h = jnp.pad(fW2, ((0, 0), (0, N_pad - OUT)))                # (H, N_pad)
    Wo_c = jnp.zeros((Ctot, N_pad), f32)
    Wo_c = Wo_c.at[:Cd, OUT:OUT + Dd_out].set(dWd)
    Wo_c = Wo_c.at[Cd:, OUT + Dd_out:OUT + Dd_out + Dc_out].set(cWd)
    bo = jnp.pad(jnp.concatenate([fb2, dbd, cbd], axis=1),
                 ((0, 0), (0, N_pad - N_out)))                     # (1, N_pad)

    inputs = [x_p, We, be, fW1_dc, fb1]
    if code_interactions:
        fW1_i = fW1[Ctot:]                                         # (Cd*Cc, H)
        # (code @ ed)[b, i*Cc+j] = d_code[b, i]; (code @ ec)[b, i*Cc+j] = c_code[b, j]
        ed = jnp.concatenate(
            [jnp.kron(jnp.eye(Cd, dtype=f32), jnp.ones((1, Cc), f32)),
             jnp.zeros((Cc, Cd * Cc), f32)], axis=0)               # (Ctot, Cd*Cc)
        ec = jnp.concatenate(
            [jnp.zeros((Cd, Cd * Cc), f32),
             jnp.kron(jnp.ones((1, Cd), f32), jnp.eye(Cc, dtype=f32))], axis=0)
        inputs += [fW1_i, ed, ec]
    inputs += [Wo_h, Wo_c, bo]

    def batch_spec(feat):
        return pl.BlockSpec((tile, feat), lambda i: (i, 0))

    def const_spec(arr):  # full-array block, constant index map -> VMEM-resident
        nd = arr.ndim
        return pl.BlockSpec(arr.shape, lambda i, nd=nd: (0,) * nd)

    in_specs = [batch_spec(Din)] + [const_spec(a) for a in inputs[1:]]
    out_shape = jax.ShapeDtypeStruct((B_pad, N_pad), f32)
    out_specs = batch_spec(N_pad)

    flops = 2 * B_pad * (Din * Ctot + Ctot * H + (H + Ctot) * N_pad)
    if code_interactions:
        flops += 2 * B_pad * (2 * Ctot * Cd * Cc + Cd * Cc * H)
    bytes_accessed = (x_p.dtype.itemsize * B_pad * Din
                      + 4 * B_pad * N_pad
                      + 4 * sum(int(a.size) for a in inputs[1:]))

    out_p = pl.pallas_call(
        _make_kernel(code_interactions),
        grid=grid,
        in_specs=in_specs,
        out_specs=out_specs,
        out_shape=out_shape,
        compiler_params=pltpu.CompilerParams(
            dimension_semantics=("parallel",),
            vmem_limit_bytes=32 * 1024 * 1024),
        cost_estimate=pl.CostEstimate(flops=int(flops), transcendentals=0,
                                      bytes_accessed=int(bytes_accessed)),
    )(*inputs)

    # Strip batch padding; slice the packed lanes back into the three outputs.
    pred = out_p[:B, :OUT]
    drug_rec = out_p[:B, OUT:OUT + Dd_out]
    cell_rec = out_p[:B, OUT + Dd_out:OUT + Dd_out + Dc_out]
    return pred, drug_rec, cell_rec


def _reference(drug_features, cell_line_features, p, *, code_interactions=True):
    """Pure-JAX reference mirroring the PyTorch forward."""
    row = lambda b: jnp.asarray(b, jnp.float32).reshape(1, -1)
    d_code = jnp.maximum(drug_features @ p["dWe"] + row(p["dbe"]), 0.0)
    d_rec = d_code @ p["dWd"] + row(p["dbd"])
    c_code = jnp.maximum(cell_line_features @ p["cWe"] + row(p["cbe"]), 0.0)
    c_rec = c_code @ p["cWd"] + row(p["cbd"])
    if code_interactions:
        inter = (d_code[:, :, None] * c_code[:, None, :]).reshape(d_code.shape[0], -1)
        x = jnp.concatenate([d_code, c_code, inter], axis=1)
    else:
        x = jnp.concatenate([d_code, c_code], axis=1)
    h = jnp.maximum(x @ p["fW1"] + row(p["fb1"]), 0.0)
    pred = h @ p["fW2"] + row(p["fb2"])
    return pred, d_rec, c_rec


if __name__ == "__main__":
    key = jax.random.PRNGKey(0)
    B = 32           # batch (tile cap gives a 2-step grid -> exercises pipeline)
    D_drug = 64      # drug feature dim
    D_cell = 32      # cell-line feature dim
    Cd = 16          # drug code dim
    Cc = 16          # cell-line code dim
    H = 32           # forward-network hidden dim
    OUT = 1          # response prediction dim
    concat_dim = Cd + Cc + Cd * Cc

    ks = jax.random.split(key, 14)
    s = 0.1
    params = {
        "dWe": s * jax.random.normal(ks[0], (D_drug, Cd), jnp.float32),
        "dbe": s * jax.random.normal(ks[1], (Cd,), jnp.float32),
        "dWd": s * jax.random.normal(ks[2], (Cd, D_drug), jnp.float32),
        "dbd": s * jax.random.normal(ks[3], (D_drug,), jnp.float32),
        "cWe": s * jax.random.normal(ks[4], (D_cell, Cc), jnp.float32),
        "cbe": s * jax.random.normal(ks[5], (Cc,), jnp.float32),
        "cWd": s * jax.random.normal(ks[6], (Cc, D_cell), jnp.float32),
        "cbd": s * jax.random.normal(ks[7], (D_cell,), jnp.float32),
        "fW1": s * jax.random.normal(ks[8], (concat_dim, H), jnp.float32),
        "fb1": s * jax.random.normal(ks[9], (H,), jnp.float32),
        "fW2": s * jax.random.normal(ks[10], (H, OUT), jnp.float32),
        "fb2": s * jax.random.normal(ks[11], (OUT,), jnp.float32),
    }
    drug = jax.random.normal(ks[12], (B, D_drug), jnp.float32)
    cell = jax.random.normal(ks[13], (B, D_cell), jnp.float32)

    # --- code_interactions=True path (f32 streaming) --------------------------
    fwd = jax.jit(functools.partial(rec_system_code_concatenation,
                                    code_interactions=True))
    pred, d_rec, c_rec = jax.block_until_ready(fwd(drug, cell, params))
    pred_r, d_rec_r, c_rec_r = _reference(drug, cell, params, code_interactions=True)
    assert jnp.allclose(pred, pred_r, atol=1e-3, rtol=1e-3)
    assert jnp.allclose(d_rec, d_rec_r, atol=1e-3, rtol=1e-3)
    assert jnp.allclose(c_rec, c_rec_r, atol=1e-3, rtol=1e-3)

    # --- code_interactions=False path (module default) ------------------------
    params_ni = dict(params, fW1=params["fW1"][:Cd + Cc])
    fwd_ni = jax.jit(functools.partial(rec_system_code_concatenation,
                                       code_interactions=False))
    pred2, d_rec2, c_rec2 = jax.block_until_ready(fwd_ni(drug, cell, params_ni))
    pred2_r, d_rec2_r, c_rec2_r = _reference(drug, cell, params_ni,
                                             code_interactions=False)
    assert jnp.allclose(pred2, pred2_r, atol=1e-3, rtol=1e-3)
    assert jnp.allclose(d_rec2, d_rec2_r, atol=1e-3, rtol=1e-3)
    assert jnp.allclose(c_rec2, c_rec2_r, atol=1e-3, rtol=1e-3)

    # --- bf16 activation streaming (HBM-bandwidth optimization) ---------------
    fwd_bf16 = jax.jit(functools.partial(rec_system_code_concatenation,
                                         code_interactions=True,
                                         stream_dtype=jnp.bfloat16))
    pred3, d_rec3, c_rec3 = jax.block_until_ready(fwd_bf16(drug, cell, params))
    assert jnp.allclose(pred3, pred_r, atol=1e-1, rtol=1e-1)
    assert jnp.allclose(d_rec3, d_rec_r, atol=1e-1, rtol=1e-1)
    assert jnp.allclose(c_rec3, c_rec_r, atol=1e-1, rtol=1e-1)

    print("KERNEL_OK")
</pallas_src>

<mosaic_0001>
module attributes {stable_mosaic.version = 11 : i64} {
  func.func @kernel(%arg0: i32, %arg1: memref<16x96xf32, #tpu.memory_space<vmem>>, %arg2: memref<96x32xf32, #tpu.memory_space<vmem>>, %arg3: memref<1x32xf32, #tpu.memory_space<vmem>>, %arg4: memref<32x32xf32, #tpu.memory_space<vmem>>, %arg5: memref<1x32xf32, #tpu.memory_space<vmem>>, %arg6: memref<256x32xf32, #tpu.memory_space<vmem>>, %arg7: memref<32x256xf32, #tpu.memory_space<vmem>>, %arg8: memref<32x256xf32, #tpu.memory_space<vmem>>, %arg9: memref<32x128xf32, #tpu.memory_space<vmem>>, %arg10: memref<32x128xf32, #tpu.memory_space<vmem>>, %arg11: memref<1x128xf32, #tpu.memory_space<vmem>>, %arg12: memref<16x128xf32, #tpu.memory_space<vmem>>) attributes {dimension_semantics = [#tpu.dimension_semantics<parallel>], iteration_bounds = array<i64: 2>, scalar_prefetch = 0 : i64, scratch_operands = 0 : i64, tpu.core_type = #tpu.core_type<tc>, window_params = [{transform_indices = @transform_0, window_bounds = array<i64: 16, 96>}, {pipeline_mode = #tpu.pipeline_mode<synchronous>, transform_indices = @transform_1, window_bounds = array<i64: 96, 32>}, {pipeline_mode = #tpu.pipeline_mode<synchronous>, transform_indices = @transform_2, window_bounds = array<i64: 1, 32>}, {pipeline_mode = #tpu.pipeline_mode<synchronous>, transform_indices = @transform_3, window_bounds = array<i64: 32, 32>}, {pipeline_mode = #tpu.pipeline_mode<synchronous>, transform_indices = @transform_4, window_bounds = array<i64: 1, 32>}, {pipeline_mode = #tpu.pipeline_mode<synchronous>, transform_indices = @transform_5, window_bounds = array<i64: 256, 32>}, {pipeline_mode = #tpu.pipeline_mode<synchronous>, transform_indices = @transform_6, window_bounds = array<i64: 32, 256>}, {pipeline_mode = #tpu.pipeline_mode<synchronous>, transform_indices = @transform_7, window_bounds = array<i64: 32, 256>}, {pipeline_mode = #tpu.pipeline_mode<synchronous>, transform_indices = @transform_8, window_bounds = array<i64: 32, 128>}, {pipeline_mode = #tpu.pipeline_mode<synchronous>, transform_indices = @transform_9, window_bounds = array<i64: 32, 128>}, {pipeline_mode = #tpu.pipeline_mode<synchronous>, transform_indices = @transform_10, window_bounds = array<i64: 1, 128>}, {transform_indices = @transform_11, window_bounds = array<i64: 16, 128>}]} {
    %c0 = arith.constant 0 : index
    %c0_0 = arith.constant 0 : index
    %0 = vector.load %arg1[%c0, %c0_0] : memref<16x96xf32, #tpu.memory_space<vmem>>, vector<16x96xf32>
    %c0_1 = arith.constant 0 : index
    %c0_2 = arith.constant 0 : index
    %1 = vector.load %arg2[%c0_1, %c0_2] : memref<96x32xf32, #tpu.memory_space<vmem>>, vector<96x32xf32>
    %cst = arith.constant dense<0.000000e+00> : vector<16x32xf32>
    %2 = tpu.matmul %0, %1, %cst {dimension_numbers = #tpu.dot_dimension_numbers<[1], [0], [0], [1], [0, 0, 1, 1], [], []>} : vector<16x96xf32>, vector<96x32xf32>, vector<16x32xf32> -> vector<16x32xf32>
    %c0_3 = arith.constant 0 : index
    %c0_4 = arith.constant 0 : index
    %3 = vector.load %arg3[%c0_3, %c0_4] : memref<1x32xf32, #tpu.memory_space<vmem>>, vector<1x32xf32>
    %4 = vector.broadcast %3 : vector<1x32xf32> to vector<16x32xf32>
    %5 = arith.addf %2, %4 : vector<16x32xf32>
    %cst_5 = arith.constant 0.000000e+00 : f32
    %6 = vector.broadcast %cst_5 : f32 to vector<16x32xf32>
    %7 = arith.maximumf %5, %6 : vector<16x32xf32>
    %c0_6 = arith.constant 0 : index
    %c0_7 = arith.constant 0 : index
    %8 = vector.load %arg4[%c0_6, %c0_7] : memref<32x32xf32, #tpu.memory_space<vmem>>, vector<32x32xf32>
    %cst_8 = arith.constant dense<0.000000e+00> : vector<16x32xf32>
    %9 = tpu.matmul %7, %8, %cst_8 {dimension_numbers = #tpu.dot_dimension_numbers<[1], [0], [0], [1], [0, 0, 1, 1], [], []>} : vector<16x32xf32>, vector<32x32xf32>, vector<16x32xf32> -> vector<16x32xf32>
    %c0_9 = arith.constant 0 : index
    %c0_10 = arith.constant 0 : index
    %10 = vector.load %arg5[%c0_9, %c0_10] : memref<1x32xf32, #tpu.memory_space<vmem>>, vector<1x32xf32>
    %11 = vector.broadcast %10 : vector<1x32xf32> to vector<16x32xf32>
    %12 = arith.addf %9, %11 : vector<16x32xf32>
    %c0_11 = arith.constant 0 : index
    %c0_12 = arith.constant 0 : index
    %13 = vector.load %arg7[%c0_11, %c0_12] : memref<32x256xf32, #tpu.memory_space<vmem>>, vector<32x256xf32>
    %cst_13 = arith.constant dense<0.000000e+00> : vector<16x256xf32>
    %14 = tpu.matmul %7, %13, %cst_13 {dimension_numbers = #tpu.dot_dimension_numbers<[1], [0], [0], [1], [0, 0, 1, 1], [], []>} : vector<16x32xf32>, vector<32x256xf32>, vector<16x256xf32> -> vector<16x256xf32>
    %c0_14 = arith.constant 0 : index
    %c0_15 = arith.constant 0 : index
    %15 = vector.load %arg8[%c0_14, %c0_15] : memref<32x256xf32, #tpu.memory_space<vmem>>, vector<32x256xf32>
    %cst_16 = arith.constant dense<0.000000e+00> : vector<16x256xf32>
    %16 = tpu.matmul %7, %15, %cst_16 {dimension_numbers = #tpu.dot_dimension_numbers<[1], [0], [0], [1], [0, 0, 1, 1], [], []>} : vector<16x32xf32>, vector<32x256xf32>, vector<16x256xf32> -> vector<16x256xf32>
    %17 = arith.mulf %14, %16 : vector<16x256xf32>
    %c0_17 = arith.constant 0 : index
    %c0_18 = arith.constant 0 : index
    %18 = vector.load %arg6[%c0_17, %c0_18] : memref<256x32xf32, #tpu.memory_space<vmem>>, vector<256x32xf32>
    %cst_19 = arith.constant dense<0.000000e+00> : vector<16x32xf32>
    %19 = tpu.matmul %17, %18, %cst_19 {dimension_numbers = #tpu.dot_dimension_numbers<[1], [0], [0], [1], [0, 0, 1, 1], [], []>} : vector<16x256xf32>, vector<256x32xf32>, vector<16x32xf32> -> vector<16x32xf32>
    %20 = arith.addf %12, %19 : vector<16x32xf32>
    %cst_20 = arith.constant 0.000000e+00 : f32
    %21 = vector.broadcast %cst_20 : f32 to vector<16x32xf32>
    %22 = arith.maximumf %20, %21 : vector<16x32xf32>
    %c0_21 = arith.constant 0 : index
    %c0_22 = arith.constant 0 : index
    %23 = vector.load %arg9[%c0_21, %c0_22] : memref<32x128xf32, #tpu.memory_space<vmem>>, vector<32x128xf32>
    %cst_23 = arith.constant dense<0.000000e+00> : vector<16x128xf32>
    %24 = tpu.matmul %22, %23, %cst_23 {dimension_numbers = #tpu.dot_dimension_numbers<[1], [0], [0], [1], [0, 0, 1, 1], [], []>} : vector<16x32xf32>, vector<32x128xf32>, vector<16x128xf32> -> vector<16x128xf32>
    %c0_24 = arith.constant 0 : index
    %c0_25 = arith.constant 0 : index
    %25 = vector.load %arg10[%c0_24, %c0_25] : memref<32x128xf32, #tpu.memory_space<vmem>>, vector<32x128xf32>
    %cst_26 = arith.constant dense<0.000000e+00> : vector<16x128xf32>
    %26 = tpu.matmul %7, %25, %cst_26 {dimension_numbers = #tpu.dot_dimension_numbers<[1], [0], [0], [1], [0, 0, 1, 1], [], []>} : vector<16x32xf32>, vector<32x128xf32>, vector<16x128xf32> -> vector<16x128xf32>
    %27 = arith.addf %24, %26 : vector<16x128xf32>
    %c0_27 = arith.constant 0 : index
    %c0_28 = arith.constant 0 : index
    %28 = vector.load %arg11[%c0_27, %c0_28] : memref<1x128xf32, #tpu.memory_space<vmem>>, vector<1x128xf32>
    %29 = vector.broadcast %28 : vector<1x128xf32> to vector<16x128xf32>
    %30 = arith.addf %27, %29 : vector<16x128xf32>
    %c0_29 = arith.constant 0 : index
    %c0_30 = arith.constant 0 : index
    %31 = vector.load %arg12[%c0_29, %c0_30] : memref<16x128xf32, #tpu.memory_space<vmem>>, vector<16x128xf32>
    tpu.vector_store %arg12[%c0_29, %c0_30], %30 {strides = array<i32>} : memref<16x128xf32, #tpu.memory_space<vmem>>, vector<16x128xf32>,
    return
  }
  func.func @transform_0(%arg0: i32) -> (i32, i32) {
    %c0_i32 = arith.constant 0 : i32
    %c0_i32_0 = arith.constant 0 : i32
    return %arg0, %c0_i32 : i32, i32
  }
  func.func @transform_1(%arg0: i32) -> (i32, i32) {
    %c0_i32 = arith.constant 0 : i32
    %c0_i32_0 = arith.constant 0 : i32
    %c0_i32_1 = arith.constant 0 : i32
    return %c0_i32, %c0_i32_0 : i32, i32
  }
  func.func @transform_2(%arg0: i32) -> (i32, i32) {
    %c0_i32 = arith.constant 0 : i32
    %c0_i32_0 = arith.constant 0 : i32
    %c0_i32_1 = arith.constant 0 : i32
    return %c0_i32, %c0_i32_0 : i32, i32
  }
  func.func @transform_3(%arg0: i32) -> (i32, i32) {
    %c0_i32 = arith.constant 0 : i32
    %c0_i32_0 = arith.constant 0 : i32
    %c0_i32_1 = arith.constant 0 : i32
    return %c0_i32, %c0_i32_0 : i32, i32
  }
  func.func @transform_4(%arg0: i32) -> (i32, i32) {
    %c0_i32 = arith.constant 0 : i32
    %c0_i32_0 = arith.constant 0 : i32
    %c0_i32_1 = arith.constant 0 : i32
    return %c0_i32, %c0_i32_0 : i32, i32
  }
  func.func @transform_5(%arg0: i32) -> (i32, i32) {
    %c0_i32 = arith.constant 0 : i32
    %c0_i32_0 = arith.constant 0 : i32
    %c0_i32_1 = arith.constant 0 : i32
    return %c0_i32, %c0_i32_0 : i32, i32
  }
  func.func @transform_6(%arg0: i32) -> (i32, i32) {
    %c0_i32 = arith.constant 0 : i32
    %c0_i32_0 = arith.constant 0 : i32
    %c0_i32_1 = arith.constant 0 : i32
    return %c0_i32, %c0_i32_0 : i32, i32
  }
  func.func @transform_7(%arg0: i32) -> (i32, i32) {
    %c0_i32 = arith.constant 0 : i32
    %c0_i32_0 = arith.constant 0 : i32
    %c0_i32_1 = arith.constant 0 : i32
    return %c0_i32, %c0_i32_0 : i32, i32
  }
  func.func @transform_8(%arg0: i32) -> (i32, i32) {
    %c0_i32 = arith.constant 0 : i32
    %c0_i32_0 = arith.constant 0 : i32
    %c0_i32_1 = arith.constant 0 : i32
    return %c0_i32, %c0_i32_0 : i32, i32
  }
  func.func @transform_9(%arg0: i32) -> (i32, i32) {
    %c0_i32 = arith.constant 0 : i32
    %c0_i32_0 = arith.constant 0 : i32
    %c0_i32_1 = arith.constant 0 : i32
    return %c0_i32, %c0_i32_0 : i32, i32
  }
  func.func @transform_10(%arg0: i32) -> (i32, i32) {
    %c0_i32 = arith.constant 0 : i32
    %c0_i32_0 = arith.constant 0 : i32
    %c0_i32_1 = arith.constant 0 : i32
    return %c0_i32, %c0_i32_0 : i32, i32
  }
  func.func @transform_11(%arg0: i32) -> (i32, i32) {
    %c0_i32 = arith.constant 0 : i32
    %c0_i32_0 = arith.constant 0 : i32
    return %arg0, %c0_i32 : i32, i32
  }
}

</mosaic_0001>

<llo_original>
// kernel: rec_system_code_concatenation.1
$region0: #{rec_system_code_concatenation.1}
  #allocation0 [shape = 'u32[]', space=smem, size = 0x4, offset = 0x4, fixed_abs, tag = 'smem constant byte address 0x4 - core index']
  #allocation1 [shape = 'u32[144,128]{1,0:T(1,128)}', space=vmem, size = 0x12000, scoped, tag = 'internal scratch']
  %s0 = inlined_call_operand.vmem [shape: f32[32,96], index: 0, kind: input, shape index: {}]
  %s1 = inlined_call_operand.vmem [shape: f32[96,32], index: 1, kind: input, shape index: {}]
  %s2 = inlined_call_operand.vmem [shape: f32[1,32], index: 2, kind: input, shape index: {}]
  %s3 = inlined_call_operand.vmem [shape: f32[32,32], index: 3, kind: input, shape index: {}]
  %s4 = inlined_call_operand.vmem [shape: f32[1,32], index: 4, kind: input, shape index: {}]
  %s5 = inlined_call_operand.vmem [shape: f32[256,32], index: 5, kind: input, shape index: {}]
  %s6 = inlined_call_operand.vmem [shape: f32[32,256], index: 6, kind: input, shape index: {}]
  %s7 = inlined_call_operand.vmem [shape: f32[32,256], index: 7, kind: input, shape index: {}]
  %s8 = inlined_call_operand.vmem [shape: f32[32,128], index: 8, kind: input, shape index: {}]
  %s9 = inlined_call_operand.vmem [shape: f32[32,128], index: 9, kind: input, shape index: {}]
  %s10 = inlined_call_operand.vmem [shape: f32[1,128], index: 10, kind: input, shape index: {}]
  %s11 = inlined_call_operand.vmem [shape: f32[32,128], index: 11, kind: output, shape index: {}]
  %s12 = sld [smem:[#allocation0]]
  $region77: #{rec_system_code_concatenation.1} parent=0
    _
  %s14 = ssub.s32 1, %s12
  %s15 = scalar_select 0, %s14, %s12
  loop: start=0, step=1, limit=4
  $region2: #{rec_system_code_concatenation.1} parent=0 // loop_pre_header
    _
  $region3: #{rec_system_code_concatenation.1} parent=0 // loop_header
    %s17 = sphi 0, %s21
    %p18 = scmp.ge.s32.totalorder %s17, 4
    %s27 = sphi 0, %s29
    %s30 = sphi 0, %s27
    %s31 = sphi 0, %s30
    %s47 = sphi 0, %s31
    %s51 = sphi 0, %s51
    %s53 = sphi 0, %s51
    %s54 = sphi 0, %s53
    %s68 = sphi 0, %s54
    %s72 = sphi 0, %s72
    %s74 = sphi 0, %s72
    %s75 = sphi 0, %s74
    %s89 = sphi 0, %s75
    %s93 = sphi 0, %s93
    %s95 = sphi 0, %s93
    %s96 = sphi 0, %s95
    %s110 = sphi 0, %s96
    %s114 = sphi 0, %s114
    %s116 = sphi 0, %s114
    %s117 = sphi 0, %s116
    %s131 = sphi 0, %s117
    %s135 = sphi 0, %s135
    %s137 = sphi 0, %s135
    %s138 = sphi 0, %s137
    %s152 = sphi 0, %s138
    %s156 = sphi 0, %s156
    %s158 = sphi 0, %s156
    %s159 = sphi 0, %s158
    %s173 = sphi 0, %s159
    %s177 = sphi 0, %s177
    %s179 = sphi 0, %s177
    %s180 = sphi 0, %s179
    %s194 = sphi 0, %s180
    %s198 = sphi 0, %s198
    %s200 = sphi 0, %s198
    %s201 = sphi 0, %s200
    %s215 = sphi 0, %s201
    %s219 = sphi 0, %s219
    %s221 = sphi 0, %s219
    %s222 = sphi 0, %s221
    %s236 = sphi 0, %s222
    %s240 = sphi 0, %s240
    %s242 = sphi 0, %s240
    %s243 = sphi 0, %s242
    %s257 = sphi 0, %s243
    %s263 = sphi 0, %s265
    %s266 = sphi 0, %s263
    %s267 = sphi 0, %s266
    %s283 = sphi 0, %s267
  $region4: #{rec_system_code_concatenation.1} parent=0 // loop_header_branch
    %20 = sbr.rel (%p18) target = $region8
  $region5: #{rec_system_code_concatenation.1} parent=0 // loop_body
    %s22 = ssub.s32 %s17, 1
    %s23 = ssub.s32 %s17, 2
    %s24 = sadd.s32 %s17, 1
    %s25 = ssub.s32 %s17, %s24
    %p26 = scmp.eq.s32.totalorder %s25, 0
    %s28 = sadd.s32 %s27, 1
    %s29 = scalar_select %p26, %s27, %s28
    %p32 = pneg %p26
    %p33 = scmp.eq.s32.totalorder %s17, 1
    %p34 = por %p32, %p33
    %p35 = scmp.ne.s32.totalorder %s27, %s30
    %p36 = scmp.eq.s32.totalorder %s17, 0
    %p37 = por %p35, %p36
    %p38 = scmp.ne.s32.totalorder %s27, %s30
    %p39 = scmp.eq.s32.totalorder %s22, 1
    %p40 = por %p38, %p39
    %p41 = scmp.ne.s32.totalorder %s30, %s31
    %p42 = scmp.eq.s32.totalorder %s22, 0
    %p43 = por %p41, %p42
    %p44 = scmp.ne.s32.totalorder %s30, %s31
    %p45 = scmp.eq.s32.totalorder %s23, 1
    %p46 = por %p44, %p45
    %p48 = scmp.ne.s32.totalorder %s31, %s47
    %p49 = scmp.eq.s32.totalorder %s23, 0
    %p50 = por %p48, %p49
    %s52 = sadd.s32 %s51, 1
    %p55 = scmp.eq.s32.totalorder %s17, 1
    %p56 = scmp.ne.s32.totalorder %s51, %s53
    %p57 = scmp.eq.s32.totalorder %s17, 0
    %p58 = por %p56, %p57
    %p59 = scmp.ne.s32.totalorder %s51, %s53
    %p60 = scmp.eq.s32.totalorder %s22, 1
    %p61 = por %p59, %p60
    %p62 = scmp.ne.s32.totalorder %s53, %s54
    %p63 = scmp.eq.s32.totalorder %s22, 0
    %p64 = por %p62, %p63
    %p65 = scmp.ne.s32.totalorder %s53, %s54
    %p66 = scmp.eq.s32.totalorder %s23, 1
    %p67 = por %p65, %p66
    %p69 = scmp.ne.s32.totalorder %s54, %s68
    %p70 = scmp.eq.s32.totalorder %s23, 0
    %p71 = por %p69, %p70
    %s73 = sadd.s32 %s72, 1
    %p76 = scmp.eq.s32.totalorder %s17, 1
    %p77 = scmp.ne.s32.totalorder %s72, %s74
    %p78 = scmp.eq.s32.totalorder %s17, 0
    %p79 = por %p77, %p78
    %p80 = scmp.ne.s32.totalorder %s72, %s74
    %p81 = scmp.eq.s32.totalorder %s22, 1
    %p82 = por %p80, %p81
    %p83 = scmp.ne.s32.totalorder %s74, %s75
    %p84 = scmp.eq.s32.totalorder %s22, 0
    %p85 = por %p83, %p84
    %p86 = scmp.ne.s32.totalorder %s74, %s75
    %p87 = scmp.eq.s32.totalorder %s23, 1
    %p88 = por %p86, %p87
    %p90 = scmp.ne.s32.totalorder %s75, %s89
    %p91 = scmp.eq.s32.totalorder %s23, 0
    %p92 = por %p90, %p91
    %s94 = sadd.s32 %s93, 1
    %p97 = scmp.eq.s32.totalorder %s17, 1
    %p98 = scmp.ne.s32.totalorder %s93, %s95
    %p99 = scmp.eq.s32.totalorder %s17, 0
    %p100 = por %p98, %p99
    %p101 = scmp.ne.s32.totalorder %s93, %s95
    %p102 = scmp.eq.s32.totalorder %s22, 1
    %p103 = por %p101, %p102
    %p104 = scmp.ne.s32.totalorder %s95, %s96
    %p105 = scmp.eq.s32.totalorder %s22, 0
    %p106 = por %p104, %p105
    %p107 = scmp.ne.s32.totalorder %s95, %s96
    %p108 = scmp.eq.s32.totalorder %s23, 1
    %p109 = por %p107, %p108
    %p111 = scmp.ne.s32.totalorder %s96, %s110
    %p112 = scmp.eq.s32.totalorder %s23, 0
    %p113 = por %p111, %p112
    %s115 = sadd.s32 %s114, 1
    %p118 = scmp.eq.s32.totalorder %s17, 1
    %p119 = scmp.ne.s32.totalorder %s114, %s116
    %p120 = scmp.eq.s32.totalorder %s17, 0
    %p121 = por %p119, %p120
    %p122 = scmp.ne.s32.totalorder %s114, %s116
    %p123 = scmp.eq.s32.totalorder %s22, 1
    %p124 = por %p122, %p123
    %p125 = scmp.ne.s32.totalorder %s116, %s117
    %p126 = scmp.eq.s32.totalorder %s22, 0
    %p127 = por %p125, %p126
    %p128 = scmp.ne.s32.totalorder %s116, %s117
    %p129 = scmp.eq.s32.totalorder %s23, 1
    %p130 = por %p128, %p129
    %p132 = scmp.ne.s32.totalorder %s117, %s131
    %p133 = scmp.eq.s32.totalorder %s23, 0
    %p134 = por %p132, %p133
    %s136 = sadd.s32 %s135, 1
    %p139 = scmp.eq.s32.totalorder %s17, 1
    %p140 = scmp.ne.s32.totalorder %s135, %s137
    %p141 = scmp.eq.s32.totalorder %s17, 0
    %p142 = por %p140, %p141
    %p143 = scmp.ne.s32.totalorder %s135, %s137
    %p144 = scmp.eq.s32.totalorder %s22, 1
    %p145 = por %p143, %p144
    %p146 = scmp.ne.s32.totalorder %s137, %s138
    %p147 = scmp.eq.s32.totalorder %s22, 0
    %p148 = por %p146, %p147
    %p149 = scmp.ne.s32.totalorder %s137, %s138
    %p150 = scmp.eq.s32.totalorder %s23, 1
    %p151 = por %p149, %p150
    %p153 = scmp.ne.s32.totalorder %s138, %s152
    %p154 = scmp.eq.s32.totalorder %s23, 0
    %p155 = por %p153, %p154
    %s157 = sadd.s32 %s156, 1
    %p160 = scmp.eq.s32.totalorder %s17, 1
    %p161 = scmp.ne.s32.totalorder %s156, %s158
    %p162 = scmp.eq.s32.totalorder %s17, 0
    %p163 = por %p161, %p162
    %p164 = scmp.ne.s32.totalorder %s156, %s158
    %p165 = scmp.eq.s32.totalorder %s22, 1
    %p166 = por %p164, %p165
    %p167 = scmp.ne.s32.totalorder %s158, %s159
    %p168 = scmp.eq.s32.totalorder %s22, 0
    %p169 = por %p167, %p168
    %p170 = scmp.ne.s32.totalorder %s158, %s159
    %p171 = scmp.eq.s32.totalorder %s23, 1
    %p172 = por %p170, %p171
    %p174 = scmp.ne.s32.totalorder %s159, %s173
    %p175 = scmp.eq.s32.totalorder %s23, 0
    %p176 = por %p174, %p175
    %s178 = sadd.s32 %s177, 1
    %p181 = scmp.eq.s32.totalorder %s17, 1
    %p182 = scmp.ne.s32.totalorder %s177, %s179
    %p183 = scmp.eq.s32.totalorder %s17, 0
    %p184 = por %p182, %p183
    %p185 = scmp.ne.s32.totalorder %s177, %s179
    %p186 = scmp.eq.s32.totalorder %s22, 1
    %p187 = por %p185, %p186
    %p188 = scmp.ne.s32.totalorder %s179, %s180
    %p189 = scmp.eq.s32.totalorder %s22, 0
    %p190 = por %p188, %p189
    %p191 = scmp.ne.s32.totalorder %s179, %s180
    %p192 = scmp.eq.s32.totalorder %s23, 1
    %p193 = por %p191, %p192
    %p195 = scmp.ne.s32.totalorder %s180, %s194
    %p196 = scmp.eq.s32.totalorder %s23, 0
    %p197 = por %p195, %p196
    %s199 = sadd.s32 %s198, 1
    %p202 = scmp.eq.s32.totalorder %s17, 1
    %p203 = scmp.ne.s32.totalorder %s198, %s200
    %p204 = scmp.eq.s32.totalorder %s17, 0
    %p205 = por %p203, %p204
    %p206 = scmp.ne.s32.totalorder %s198, %s200
    %p207 = scmp.eq.s32.totalorder %s22, 1
    %p208 = por %p206, %p207
    %p209 = scmp.ne.s32.totalorder %s200, %s201
    %p210 = scmp.eq.s32.totalorder %s22, 0
    %p211 = por %p209, %p210
    %p212 = scmp.ne.s32.totalorder %s200, %s201
    %p213 = scmp.eq.s32.totalorder %s23, 1
    %p214 = por %p212, %p213
    %p216 = scmp.ne.s32.totalorder %s201, %s215
    %p217 = scmp.eq.s32.totalorder %s23, 0
    %p218 = por %p216, %p217
    %s220 = sadd.s32 %s219, 1
    %p223 = scmp.eq.s32.totalorder %s17, 1
    %p224 = scmp.ne.s32.totalorder %s219, %s221
    %p225 = scmp.eq.s32.totalorder %s17, 0
    %p226 = por %p224, %p225
    %p227 = scmp.ne.s32.totalorder %s219, %s221
    %p228 = scmp.eq.s32.totalorder %s22, 1
    %p229 = por %p227, %p228
    %p230 = scmp.ne.s32.totalorder %s221, %s222
    %p231 = scmp.eq.s32.totalorder %s22, 0
    %p232 = por %p230, %p231
    %p233 = scmp.ne.s32.totalorder %s221, %s222
    %p234 = scmp.eq.s32.totalorder %s23, 1
    %p235 = por %p233, %p234
    %p237 = scmp.ne.s32.totalorder %s222, %s236
    %p238 = scmp.eq.s32.totalorder %s23, 0
    %p239 = por %p237, %p238
    %s241 = sadd.s32 %s240, 1
    %p244 = scmp.eq.s32.totalorder %s17, 1
    %p245 = scmp.ne.s32.totalorder %s240, %s242
    %p246 = scmp.eq.s32.totalorder %s17, 0
    %p247 = por %p245, %p246
    %p248 = scmp.ne.s32.totalorder %s240, %s242
    %p249 = scmp.eq.s32.totalorder %s22, 1
    %p250 = por %p248, %p249
    %p251 = scmp.ne.s32.totalorder %s242, %s243
    %p252 = scmp.eq.s32.totalorder %s22, 0
    %p253 = por %p251, %p252
    %p254 = scmp.ne.s32.totalorder %s242, %s243
    %p255 = scmp.eq.s32.totalorder %s23, 1
    %p256 = por %p254, %p255
    %p258 = scmp.ne.s32.totalorder %s243, %s257
    %p259 = scmp.eq.s32.totalorder %s23, 0
    %p260 = por %p258, %p259
    %s261 = ssub.s32 %s17, %s24
    %p262 = scmp.eq.s32.totalorder %s261, 0
    %s264 = sadd.s32 %s263, 1
    %s265 = scalar_select %p262, %s263, %s264
    %p268 = pneg %p262
    %p269 = scmp.eq.s32.totalorder %s17, 1
    %p270 = por %p268, %p269
    %p271 = scmp.ne.s32.totalorder %s263, %s266
    %p272 = scmp.eq.s32.totalorder %s17, 0
    %p273 = por %p271, %p272
    %p274 = scmp.ne.s32.totalorder %s263, %s266
    %p275 = scmp.eq.s32.totalorder %s22, 1
    %p276 = por %p274, %p275
    %p277 = scmp.ne.s32.totalorder %s266, %s267
    %p278 = scmp.eq.s32.totalorder %s22, 0
    %p279 = por %p277, %p278
    %p280 = scmp.ne.s32.totalorder %s266, %s267
    %p281 = scmp.eq.s32.totalorder %s23, 1
    %p282 = por %p280, %p281
    %p284 = scmp.ne.s32.totalorder %s267, %s283
    %p285 = scmp.eq.s32.totalorder %s23, 0
    %p286 = por %p284, %p285
    %p287 = scmp.le.s32.totalorder 1, %s17
    %p288 = scmp.lt.s32.totalorder %s17, 3
    %p289 = pnand %p287, %p288
    %p290 = pneg %p289
    // Predicated region
    $region9: #{rec_system_code_concatenation.1} parent=5 // pred_check
      _
    $region10: #{rec_system_code_concatenation.1} parent=5 // pred_check_branch
      %292 = sbr.rel (%p289) target = $region12
    $region11: #{rec_system_code_concatenation.1} parent=5 // pred_region
      %s293 = ssub.s32 %s17, 1
      // Predicated region
      $region13: #{rec_system_code_concatenation.1} parent=11 // pred_check
        %p294 = pneg %p64
      $region14: #{rec_system_code_concatenation.1} parent=11 // pred_check_branch
        %296 = sbr.rel (%p294) target = $region16
      $region15: #{rec_system_code_concatenation.1} parent=11 // pred_region
        _
      $region16: #{rec_system_code_concatenation.1} parent=11 // pred_fallthru
        _
      // Predicated region
      $region17: #{rec_system_code_concatenation.1} parent=11 // pred_check
        %p297 = pneg %p85
      $region18: #{rec_system_code_concatenation.1} parent=11 // pred_check_branch
        %299 = sbr.rel (%p297) target = $region20
      $region19: #{rec_system_code_concatenation.1} parent=11 // pred_region
        _
      $region20: #{rec_system_code_concatenation.1} parent=11 // pred_fallthru
        _
      // Predicated region
      $region21: #{rec_system_code_concatenation.1} parent=11 // pred_check
        %p300 = pneg %p106
      $region22: #{rec_system_code_concatenation.1} parent=11 // pred_check_branch
        %302 = sbr.rel (%p300) target = $region24
      $region23: #{rec_system_code_concatenation.1} parent=11 // pred_region
        _
      $region24: #{rec_system_code_concatenation.1} parent=11 // pred_fallthru
        _
      // Predicated region
      $region25: #{rec_system_code_concatenation.1} parent=11 // pred_check
        %p303 = pneg %p127
      $region26: #{rec_system_code_concatenation.1} parent=11 // pred_check_branch
        %305 = sbr.rel (%p303) target = $region28
      $region27: #{rec_system_code_concatenation.1} parent=11 // pred_region
        _
      $region28: #{rec_system_code_concatenation.1} parent=11 // pred_fallthru
        _
      // Predicated region
      $region29: #{rec_system_code_concatenation.1} parent=11 // pred_check
        %p306 = pneg %p148
      $region30: #{rec_system_code_concatenation.1} parent=11 // pred_check_branch
        %308 = sbr.rel (%p306) target = $region32
      $region31: #{rec_system_code_concatenation.1} parent=11 // pred_region
        _
      $region32: #{rec_system_code_concatenation.1} parent=11 // pred_fallthru
        _
      // Predicated region
      $region33: #{rec_system_code_concatenation.1} parent=11 // pred_check
        %p309 = pneg %p169
      $region34: #{rec_system_code_concatenation.1} parent=11 // pred_check_branch
        %311 = sbr.rel (%p309) target = $region36
      $region35: #{rec_system_code_concatenation.1} parent=11 // pred_region
        _
      $region36: #{rec_system_code_concatenation.1} parent=11 // pred_fallthru
        _
      // Predicated region
      $region37: #{rec_system_code_concatenation.1} parent=11 // pred_check
        %p312 = pneg %p190
      $region38: #{rec_system_code_concatenation.1} parent=11 // pred_check_branch
        %314 = sbr.rel (%p312) target = $region40
      $region39: #{rec_system_code_concatenation.1} parent=11 // pred_region
        _
      $region40: #{rec_system_code_concatenation.1} parent=11 // pred_fallthru
        _
      // Predicated region
      $region41: #{rec_system_code_concatenation.1} parent=11 // pred_check
        %p315 = pneg %p211
      $region42: #{rec_system_code_concatenation.1} parent=11 // pred_check_branch
        %317 = sbr.rel (%p315) target = $region44
      $region43: #{rec_system_code_concatenation.1} parent=11 // pred_region
        _
      $region44: #{rec_system_code_concatenation.1} parent=11 // pred_fallthru
        _
      // Predicated region
      $region45: #{rec_system_code_concatenation.1} parent=11 // pred_check
        %p318 = pneg %p232
      $region46: #{rec_system_code_concatenation.1} parent=11 // pred_check_branch
        %320 = sbr.rel (%p318) target = $region48
      $region47: #{rec_system_code_concatenation.1} parent=11 // pred_region
        _
      $region48: #{rec_system_code_concatenation.1} parent=11 // pred_fallthru
        _
      // Predicated region
      $region49: #{rec_system_code_concatenation.1} parent=11 // pred_check
        %p321 = pneg %p253
      $region50: #{rec_system_code_concatenation.1} parent=11 // pred_check_branch
        %323 = sbr.rel (%p321) target = $region52
      $region51: #{rec_system_code_concatenation.1} parent=11 // pred_region
        _
      $region52: #{rec_system_code_concatenation.1} parent=11 // pred_fallthru
        _
    $region12: #{rec_system_code_concatenation.1} parent=5 // pred_fallthru
      _
    %p324 = scmp.lt.s32.totalorder %s17, 2
    // Predicated region
    $region53: #{rec_system_code_concatenation.1} parent=5 // pred_check
      %p325 = pneg %p324
    $region54: #{rec_system_code_concatenation.1} parent=5 // pred_check_branch
      %327 = sbr.rel (%p325) target = $region56
    $region55: #{rec_system_code_concatenation.1} parent=5 // pred_region
      // Predicated region
      $region57: #{rec_system_code_concatenation.1} parent=55 // pred_check
        %p328 = pneg %p37
      $region58: #{rec_system_code_concatenation.1} parent=55 // pred_check_branch
        %330 = sbr.rel (%p328) target = $region60
      $region59: #{rec_system_code_concatenation.1} parent=55 // pred_region
        %s331 = smul.u32 2, %s17
        %p332 = scmp.lt.s32.totalorder %s331, 3
        %s333 = scalar_select %p332, %s331, 3
        %s334 = smul.addr %s333, 8
        %s335 = scalar_lea.vmem %s0, %s334
        %s336 = smul.u32 2, %s17
      $region60: #{rec_system_code_concatenation.1} parent=55 // pred_fallthru
        _
    $region56: #{rec_system_code_concatenation.1} parent=5 // pred_fallthru
      _
    %p337 = scmp.le.s32.totalorder 1, %s17
    %p338 = scmp.lt.s32.totalorder %s17, 3
    %p339 = pnand %p337, %p338
    %p340 = pneg %p339
    // Predicated region
    $region61: #{rec_system_code_concatenation.1} parent=5 // pred_check
      _
    $region62: #{rec_system_code_concatenation.1} parent=5 // pred_check_branch
      %342 = sbr.rel (%p339) target = $region64
    $region63: #{rec_system_code_concatenation.1} parent=5 // pred_region
      %s343 = ssub.s32 %s17, 1
      %s344 = smul.u32 2, %s22
      %p345 = scmp.lt.s32.totalorder %s344, 3
      %s346 = scalar_select %p345, %s344, 3
      %s347 = smul.addr %s346, 8
      %s348 = scalar_lea.vmem %s0, %s347
      %p349 = pneg %p43
      %p350 = pneg %p40
      %p351 = pneg %p64
      %p352 = pneg %p61
      %p353 = pneg %p85
      %p354 = pneg %p82
      %p355 = pneg %p106
      %p356 = pneg %p103
      %p357 = pneg %p127
      %p358 = pneg %p124
      %p359 = pneg %p148
      %p360 = pneg %p145
      %p361 = pneg %p169
      %p362 = pneg %p166
      %p363 = pneg %p190
      %p364 = pneg %p187
      %p365 = pneg %p211
      %p366 = pneg %p208
      %p367 = pneg %p232
      %p368 = pneg %p229
      %p369 = pneg %p253
      %p370 = pneg %p250
      %p371 = pneg %p279
      %p372 = pneg %p276
      %s373 = smul.u32 2, %s22
      %p374 = scmp.lt.s32.totalorder %s373, 3
      %s375 = scalar_select %p374, %s373, 3
      %s376 = smul.addr %s375, 8
      %s377 = scalar_lea.vmem %s11, %s376
      %s378 = smul.u32 2, %s22
      %p379 = scmp.lt.s32.totalorder %s378, 3
      %s380 = scalar_select %p379, %s378, 3
      %s381 = smul.addr %s380, 8
      %s382 = scalar_lea.vmem %s0, %s381
      %s383 = smul.u32 2, %s22
      %s384 = smul.u32 2, %s22
      %p385 = scmp.lt.s32.totalorder %s384, 3
      %s386 = scalar_select %p385, %s384, 3
      %s387 = smul.addr %s386, 8
      %s388 = scalar_lea.vmem %s11, %s387
      %s389 = smul.u32 2, %s22
      %v390 = vld [vmem:[%s382] sm:$0xff]
      %v391 = vld [vmem:[%s382 + $0x8] sm:$0xff]
      %v392 = vld [vmem:[%s1] sm:$0xff]
      %v393 = vld [vmem:[%s1 + $0x8] sm:$0xff]
      %v394 = vld [vmem:[%s1 + $0x10] sm:$0xff]
      %v395 = vld [vmem:[%s1 + $0x18] sm:$0xff]
      %v396 = vld [vmem:[%s1 + $0x20] sm:$0xff]
      %v397 = vld [vmem:[%s1 + $0x28] sm:$0xff]
      %v398 = vld [vmem:[%s1 + $0x30] sm:$0xff]
      %v399 = vld [vmem:[%s1 + $0x38] sm:$0xff]
      %v400 = vld [vmem:[%s1 + $0x40] sm:$0xff]
      %v401 = vld [vmem:[%s1 + $0x48] sm:$0xff]
      %v402 = vld [vmem:[%s1 + $0x50] sm:$0xff]
      %v403 = vld [vmem:[%s1 + $0x58] sm:$0xff]
      %v404 = vld [vmem:[%s2] sm:$0x1]
      %v406 = vlaneseq
      %v407 = vshrl.u32 %v406, 7
      %v408 = vsub.s32 0, %v407
      %v409 = vrot.slane %v404, %v408
      %vm411 = vcmask 785408
      %v413 = vsel %vm411, %v390, 0
      %v416 = vsel %vm411, %v391, 0
      %418 = vmatprep.subr.mxu0 0.0
      %419 = vmatpush1.msra.mxu0 0.0
      %420 = vmatprep.subr.mxu0 0.0
      %421 = vmatpush1.msra.mxu0 0.0
      %422 = vmatprep.subr.mxu0 0.0
      %423 = vmatpush1.msra.mxu0 0.0
      %424 = vmatprep.subr.mxu0 0.0
      %425 = vmatpush1.msra.mxu0 0.0
      %426 = vmatprep.subr.mxu0 0.0
      %427 = vmatpush1.msra.mxu0 %v403
      %428 = vmatprep.subr.mxu0 0.0
      %429 = vmatpush1.msra.mxu0 %v402
      %430 = vmatprep.subr.mxu0 0.0
      %431 = vmatpush1.msra.mxu0 %v401
      %432 = vmatprep.subr.mxu0 0.0
      %433 = vmatpush1.msra.mxu0 %v400
      %434 = vmatprep.subr.mxu0 0.0
      %435 = vmatpush1.msra.mxu0 %v399
      %436 = vmatprep.subr.mxu0 0.0
      %437 = vmatpush1.msra.mxu0 %v398
      %438 = vmatprep.subr.mxu0 0.0
      %439 = vmatpush1.msra.mxu0 %v397
      %440 = vmatprep.subr.mxu0 0.0
      %441 = vmatpush1.msra.mxu0 %v396
      %442 = vmatprep.subr.mxu0 0.0
      %443 = vmatpush1.msra.mxu0 %v395
      %444 = vmatprep.subr.mxu0 0.0
      %445 = vmatpush1.msra.mxu0 %v394
      %446 = vmatprep.subr.mxu0 0.0
      %447 = vmatpush1.msra.mxu0 %v393
      %448 = vmatprep.subr.mxu0 0.0
      %449 = vmatpush1.msra.mxu0 %v392
      %450 = vmatprep.subr.mxu0 0.0
      %451 = vmatpush2.msra.mxu0 0.0
      %452 = vmatprep.subr.mxu0 0.0
      %453 = vmatpush2.msra.mxu0 0.0
      %454 = vmatprep.subr.mxu0 0.0
      %455 = vmatpush2.msra.mxu0 0.0
      %456 = vmatprep.subr.mxu0 0.0
      %457 = vmatpush2.msra.mxu0 0.0
      %458 = vmatprep.subr.mxu0 0.0
      %459 = vmatpush2.msra.mxu0 0.0
      %460 = vmatprep.subr.mxu0 0.0
      %461 = vmatpush2.msra.mxu0 0.0
      %462 = vmatprep.subr.mxu0 0.0
      %463 = vmatpush2.msra.mxu0 0.0
      %464 = vmatprep.subr.mxu0 0.0
      %465 = vmatpush2.msra.mxu0 0.0
      %466 = vmatprep.subr.mxu0 0.0
      %467 = vmatpush2.msra.mxu0 0.0
      %468 = vmatprep.subr.mxu0 0.0
      %469 = vmatpush2.msra.mxu0 0.0
      %470 = vmatprep.subr.mxu0 0.0
      %471 = vmatpush2.msra.mxu0 0.0
      %472 = vmatprep.subr.mxu0 0.0
      %473 = vmatpush2.msra.mxu0 0.0
      %474 = vmatprep.subr.mxu0 0.0
      %475 = vmatpush2.msra.mxu0 0.0
      %476 = vmatprep.subr.mxu0 0.0
      %477 = vmatpush2.msra.mxu0 0.0
      %478 = vmatprep.subr.mxu0 0.0
      %479 = vmatpush2.msra.mxu0 0.0
      %480 = vmatprep.subr.mxu0 0.0
      %481 = vmatpush2.msra.mxu0 0.0
      %482 = vmatprep.mubr.f32.mxu0 0.0
      %483 = vmatmul.mubr.f32.gmra.mxu0 %v413
      %v484 = vpop.f32.mrf.mxu0
      %v485 = vadd.f32 %v409, %v484
      %v486 = vpop.f32.mrf.mxu0
      %487 = vmatprep.mubr.f32.mxu0 0.0
      %488 = vmatmul.mubr.f32.gmra.mxu0 %v416
      %v489 = vpop.f32.mrf.mxu0
      %v490 = vadd.f32 %v409, %v489
      %v491 = vpop.f32.mrf.mxu0
      %492 = vdwg.mxu0
      %v493 = vmax.f32 %v485, 0.0
      %v494 = vmax.f32 %v490, 0.0
      %v495 = vld [vmem:[%s3] sm:$0xff]
      %v496 = vld [vmem:[%s3 + $0x8] sm:$0xff]
      %v497 = vld [vmem:[%s3 + $0x10] sm:$0xff]
      %v498 = vld [vmem:[%s3 + $0x18] sm:$0xff]
      %v499 = vld [vmem:[%s4] sm:$0x1]
      %v501 = vlaneseq
      %v502 = vshrl.u32 %v501, 7
      %v503 = vsub.s32 0, %v502
      %v504 = vrot.slane %v499, %v503
      %vm506 = vcmask 261120
      %v508 = vsel %vm506, %v493, 0
      %v511 = vsel %vm506, %v494, 0
      %513 = vmatprep.subr.mxu0 0.0
      %514 = vmatpush1.msra.mxu0 0.0
      %515 = vmatprep.subr.mxu0 0.0
      %516 = vmatpush1.msra.mxu0 0.0
      %517 = vmatprep.subr.mxu0 0.0
      %518 = vmatpush1.msra.mxu0 0.0
      %519 = vmatprep.subr.mxu0 0.0
      %520 = vmatpush1.msra.mxu0 0.0
      %521 = vmatprep.subr.mxu0 0.0
      %522 = vmatpush1.msra.mxu0 0.0
      %523 = vmatprep.subr.mxu0 0.0
      %524 = vmatpush1.msra.mxu0 0.0
      %525 = vmatprep.subr.mxu0 0.0
      %526 = vmatpush1.msra.mxu0 0.0
      %527 = vmatprep.subr.mxu0 0.0
      %528 = vmatpush1.msra.mxu0 0.0
      %529 = vmatprep.subr.mxu0 0.0
      %530 = vmatpush1.msra.mxu0 0.0
      %531 = vmatprep.subr.mxu0 0.0
      %532 = vmatpush1.msra.mxu0 0.0
      %533 = vmatprep.subr.mxu0 0.0
      %534 = vmatpush1.msra.mxu0 0.0
      %535 = vmatprep.subr.mxu0 0.0
      %536 = vmatpush1.msra.mxu0 0.0
      %537 = vmatprep.subr.mxu0 0.0
      %538 = vmatpush1.msra.mxu0 %v498
      %539 = vmatprep.subr.mxu0 0.0
      %540 = vmatpush1.msra.mxu0 %v497
      %541 = vmatprep.subr.mxu0 0.0
      %542 = vmatpush1.msra.mxu0 %v496
      %543 = vmatprep.subr.mxu0 0.0
      %544 = vmatpush1.msra.mxu0 %v495
      %545 = vmatprep.subr.mxu0 0.0
      %546 = vmatpush2.msra.mxu0 0.0
      %547 = vmatprep.subr.mxu0 0.0
      %548 = vmatpush2.msra.mxu0 0.0
      %549 = vmatprep.subr.mxu0 0.0
      %550 = vmatpush2.msra.mxu0 0.0
      %551 = vmatprep.subr.mxu0 0.0
      %552 = vmatpush2.msra.mxu0 0.0
      %553 = vmatprep.subr.mxu0 0.0
      %554 = vmatpush2.msra.mxu0 0.0
      %555 = vmatprep.subr.mxu0 0.0
      %556 = vmatpush2.msra.mxu0 0.0
      %557 = vmatprep.subr.mxu0 0.0
      %558 = vmatpush2.msra.mxu0 0.0
      %559 = vmatprep.subr.mxu0 0.0
      %560 = vmatpush2.msra.mxu0 0.0
      %561 = vmatprep.subr.mxu0 0.0
      %562 = vmatpush2.msra.mxu0 0.0
      %563 = vmatprep.subr.mxu0 0.0
      %564 = vmatpush2.msra.mxu0 0.0
      %565 = vmatprep.subr.mxu0 0.0
      %566 = vmatpush2.msra.mxu0 0.0
      %567 = vmatprep.subr.mxu0 0.0
      %568 = vmatpush2.msra.mxu0 0.0
      %569 = vmatprep.subr.mxu0 0.0
      %570 = vmatpush2.msra.mxu0 0.0
      %571 = vmatprep.subr.mxu0 0.0
      %572 = vmatpush2.msra.mxu0 0.0
      %573 = vmatprep.subr.mxu0 0.0
      %574 = vmatpush2.msra.mxu0 0.0
      %575 = vmatprep.subr.mxu0 0.0
      %576 = vmatpush2.msra.mxu0 0.0
      %577 = vmatprep.mubr.f32.mxu0 0.0
      %578 = vmatmul.mubr.f32.gmra.mxu0 %v508
      %v579 = vpop.f32.mrf.mxu0
      %v580 = vadd.f32 %v504, %v579
      %v581 = vpop.f32.mrf.mxu0
      %582 = vmatprep.mubr.f32.mxu0 0.0
      %583 = vmatmul.mubr.f32.gmra.mxu0 %v511
      %v584 = vpop.f32.mrf.mxu0
      %v585 = vadd.f32 %v504, %v584
      %v586 = vpop.f32.mrf.mxu0
      %587 = vdwg.mxu0
      %v588 = vld [vmem:[%s6] sm:$0xff]
      %v589 = vld [vmem:[%s6 + $0x8] sm:$0xff]
      %v590 = vld [vmem:[%s6 + $0x10] sm:$0xff]
      %v591 = vld [vmem:[%s6 + $0x18] sm:$0xff]
      %v592 = vld [vmem:[%s6 + $0x20] sm:$0xff]
      %v593 = vld [vmem:[%s6 + $0x28] sm:$0xff]
      %v594 = vld [vmem:[%s6 + $0x30] sm:$0xff]
      %v595 = vld [vmem:[%s6 + $0x38] sm:$0xff]
      %596 = vmatprep.subr.mxu0 0.0
      %597 = vmatpush1.msra.mxu0 0.0
      %598 = vmatprep.subr.mxu0 0.0
      %599 = vmatpush1.msra.mxu0 0.0
      %600 = vmatprep.subr.mxu0 0.0
      %601 = vmatpush1.msra.mxu0 0.0
      %602 = vmatprep.subr.mxu0 0.0
      %603 = vmatpush1.msra.mxu0 0.0
      %604 = vmatprep.subr.mxu0 0.0
      %605 = vmatpush1.msra.mxu0 0.0
      %606 = vmatprep.subr.mxu0 0.0
      %607 = vmatpush1.msra.mxu0 0.0
      %608 = vmatprep.subr.mxu0 0.0
      %609 = vmatpush1.msra.mxu0 0.0
      %610 = vmatprep.subr.mxu0 0.0
      %611 = vmatpush1.msra.mxu0 0.0
      %612 = vmatprep.subr.mxu0 0.0
      %613 = vmatpush1.msra.mxu0 0.0
      %614 = vmatprep.subr.mxu0 0.0
      %615 = vmatpush1.msra.mxu0 0.0
      %616 = vmatprep.subr.mxu0 0.0
      %617 = vmatpush1.msra.mxu0 0.0
      %618 = vmatprep.subr.mxu0 0.0
      %619 = vmatpush1.msra.mxu0 0.0
      %620 = vmatprep.subr.mxu0 %v595
      %621 = vmatpush1.msra.mxu0 %v594
      %622 = vmatprep.subr.mxu0 %v593
      %623 = vmatpush1.msra.mxu0 %v592
      %624 = vmatprep.subr.mxu0 %v591
      %625 = vmatpush1.msra.mxu0 %v590
      %626 = vmatprep.subr.mxu0 %v589
      %627 = vmatpush1.msra.mxu0 %v588
      %628 = vmatprep.subr.mxu0 0.0
      %629 = vmatpush2.msra.mxu0 0.0
      %630 = vmatprep.subr.mxu0 0.0
      %631 = vmatpush2.msra.mxu0 0.0
      %632 = vmatprep.subr.mxu0 0.0
      %633 = vmatpush2.msra.mxu0 0.0
      %634 = vmatprep.subr.mxu0 0.0
      %635 = vmatpush2.msra.mxu0 0.0
      %636 = vmatprep.subr.mxu0 0.0
      %637 = vmatpush2.msra.mxu0 0.0
      %638 = vmatprep.subr.mxu0 0.0
      %639 = vmatpush2.msra.mxu0 0.0
      %640 = vmatprep.subr.mxu0 0.0
      %641 = vmatpush2.msra.mxu0 0.0
      %642 = vmatprep.subr.mxu0 0.0
      %643 = vmatpush2.msra.mxu0 0.0
      %644 = vmatprep.subr.mxu0 0.0
      %645 = vmatpush2.msra.mxu0 0.0
      %646 = vmatprep.subr.mxu0 0.0
      %647 = vmatpush2.msra.mxu0 0.0
      %648 = vmatprep.subr.mxu0 0.0
      %649 = vmatpush2.msra.mxu0 0.0
      %650 = vmatprep.subr.mxu0 0.0
      %651 = vmatpush2.msra.mxu0 0.0
      %652 = vmatprep.subr.mxu0 0.0
      %653 = vmatpush2.msra.mxu0 0.0
      %654 = vmatprep.subr.mxu0 0.0
      %655 = vmatpush2.msra.mxu0 0.0
      %656 = vmatprep.subr.mxu0 0.0
      %657 = vmatpush2.msra.mxu0 0.0
      %658 = vmatprep.subr.mxu0 0.0
      %659 = vmatpush2.msra.mxu0 0.0
      %660 = vmatprep.mubr.f32.mxu0 0.0
      %661 = vmatmul.mubr.f32.gmra.mxu0 %v508
      %v662 = vpop.f32.mrf.mxu0
      %v663 = vadd.f32 0.0, %v662
      %v664 = vpop.f32.mrf.mxu0
      %v665 = vadd.f32 0.0, %v664
      %666 = vmatprep.mubr.f32.mxu0 0.0
      %667 = vmatmul.mubr.f32.gmra.mxu0 %v511
      %v668 = vpop.f32.mrf.mxu0
      %v669 = vadd.f32 0.0, %v668
      %v670 = vpop.f32.mrf.mxu0
      %v671 = vadd.f32 0.0, %v670
      %672 = vdwg.mxu0
      %v673 = vld [vmem:[%s7] sm:$0xff]
      %v674 = vld [vmem:[%s7 + $0x8] sm:$0xff]
      %v675 = vld [vmem:[%s7 + $0x10] sm:$0xff]
      %v676 = vld [vmem:[%s7 + $0x18] sm:$0xff]
      %v677 = vld [vmem:[%s7 + $0x20] sm:$0xff]
      %v678 = vld [vmem:[%s7 + $0x28] sm:$0xff]
      %v679 = vld [vmem:[%s7 + $0x30] sm:$0xff]
      %v680 = vld [vmem:[%s7 + $0x38] sm:$0xff]
      %681 = vmatprep.subr.mxu0 0.0
      %682 = vmatpush1.msra.mxu0 0.0
      %683 = vmatprep.subr.mxu0 0.0
      %684 = vmatpush1.msra.mxu0 0.0
      %685 = vmatprep.subr.mxu0 0.0
      %686 = vmatpush1.msra.mxu0 0.0
      %687 = vmatprep.subr.mxu0 0.0
      %688 = vmatpush1.msra.mxu0 0.0
      %689 = vmatprep.subr.mxu0 0.0
      %690 = vmatpush1.msra.mxu0 0.0
      %691 = vmatprep.subr.mxu0 0.0
      %692 = vmatpush1.msra.mxu0 0.0
      %693 = vmatprep.subr.mxu0 0.0
      %694 = vmatpush1.msra.mxu0 0.0
      %695 = vmatprep.subr.mxu0 0.0
      %696 = vmatpush1.msra.mxu0 0.0
      %697 = vmatprep.subr.mxu0 0.0
      %698 = vmatpush1.msra.mxu0 0.0
      %699 = vmatprep.subr.mxu0 0.0
      %700 = vmatpush1.msra.mxu0 0.0
      %701 = vmatprep.subr.mxu0 0.0
      %702 = vmatpush1.msra.mxu0 0.0
      %703 = vmatprep.subr.mxu0 0.0
      %704 = vmatpush1.msra.mxu0 0.0
      %705 = vmatprep.subr.mxu0 %v680
      %706 = vmatpush1.msra.mxu0 %v679
      %707 = vmatprep.subr.mxu0 %v678
      %708 = vmatpush1.msra.mxu0 %v677
      %709 = vmatprep.subr.mxu0 %v676
      %710 = vmatpush1.msra.mxu0 %v675
      %711 = vmatprep.subr.mxu0 %v674
      %712 = vmatpush1.msra.mxu0 %v673
      %713 = vmatprep.subr.mxu0 0.0
      %714 = vmatpush2.msra.mxu0 0.0
      %715 = vmatprep.subr.mxu0 0.0
      %716 = vmatpush2.msra.mxu0 0.0
      %717 = vmatprep.subr.mxu0 0.0
      %718 = vmatpush2.msra.mxu0 0.0
      %719 = vmatprep.subr.mxu0 0.0
      %720 = vmatpush2.msra.mxu0 0.0
      %721 = vmatprep.subr.mxu0 0.0
      %722 = vmatpush2.msra.mxu0 0.0
      %723 = vmatprep.subr.mxu0 0.0
      %724 = vmatpush2.msra.mxu0 0.0
      %725 = vmatprep.subr.mxu0 0.0
      %726 = vmatpush2.msra.mxu0 0.0
      %727 = vmatprep.subr.mxu0 0.0
      %728 = vmatpush2.msra.mxu0 0.0
      %729 = vmatprep.subr.mxu0 0.0
      %730 = vmatpush2.msra.mxu0 0.0
      %731 = vmatprep.subr.mxu0 0.0
      %732 = vmatpush2.msra.mxu0 0.0
      %733 = vmatprep.subr.mxu0 0.0
      %734 = vmatpush2.msra.mxu0 0.0
      %735 = vmatprep.subr.mxu0 0.0
      %736 = vmatpush2.msra.mxu0 0.0
      %737 = vmatprep.subr.mxu0 0.0
      %738 = vmatpush2.msra.mxu0 0.0
      %739 = vmatprep.subr.mxu0 0.0
      %740 = vmatpush2.msra.mxu0 0.0
      %741 = vmatprep.subr.mxu0 0.0
      %742 = vmatpush2.msra.mxu0 0.0
      %743 = vmatprep.subr.mxu0 0.0
      %744 = vmatpush2.msra.mxu0 0.0
      %745 = vmatprep.mubr.f32.mxu0 0.0
      %746 = vmatmul.mubr.f32.gmra.mxu0 %v508
      %v747 = vpop.f32.mrf.mxu0
      %v748 = vadd.f32 0.0, %v747
      %v749 = vpop.f32.mrf.mxu0
      %v750 = vadd.f32 0.0, %v749
      %751 = vmatprep.mubr.f32.mxu0 0.0
      %752 = vmatmul.mubr.f32.gmra.mxu0 %v511
      %v753 = vpop.f32.mrf.mxu0
      %v754 = vadd.f32 0.0, %v753
      %v755 = vpop.f32.mrf.mxu0
      %v756 = vadd.f32 0.0, %v755
      %757 = vdwg.mxu0
      %v758 = vmul.f32 %v663, %v748
      %v759 = vmul.f32 %v665, %v750
      %v760 = vmul.f32 %v669, %v754
      %v761 = vmul.f32 %v671, %v756
      %v762 = vld [vmem:[%s5] sm:$0xff]
      %v763 = vld [vmem:[%s5 + $0x8] sm:$0xff]
      %v764 = vld [vmem:[%s5 + $0x10] sm:$0xff]
      %v765 = vld [vmem:[%s5 + $0x18] sm:$0xff]
      %v766 = vld [vmem:[%s5 + $0x20] sm:$0xff]
      %v767 = vld [vmem:[%s5 + $0x28] sm:$0xff]
      %v768 = vld [vmem:[%s5 + $0x30] sm:$0xff]
      %v769 = vld [vmem:[%s5 + $0x38] sm:$0xff]
      %v770 = vld [vmem:[%s5 + $0x40] sm:$0xff]
      %v771 = vld [vmem:[%s5 + $0x48] sm:$0xff]
      %v772 = vld [vmem:[%s5 + $0x50] sm:$0xff]
      %v773 = vld [vmem:[%s5 + $0x58] sm:$0xff]
      %v774 = vld [vmem:[%s5 + $0x60] sm:$0xff]
      %v775 = vld [vmem:[%s5 + $0x68] sm:$0xff]
      %v776 = vld [vmem:[%s5 + $0x70] sm:$0xff]
      %v777 = vld [vmem:[%s5 + $0x78] sm:$0xff]
      %v778 = vld [vmem:[%s5 + $0x80] sm:$0xff]
      %v779 = vld [vmem:[%s5 + $0x88] sm:$0xff]
      %v780 = vld [vmem:[%s5 + $0x90] sm:$0xff]
      %v781 = vld [vmem:[%s5 + $0x98] sm:$0xff]
      %v782 = vld [vmem:[%s5 + $0xa0] sm:$0xff]
      %v783 = vld [vmem:[%s5 + $0xa8] sm:$0xff]
      %v784 = vld [vmem:[%s5 + $0xb0] sm:$0xff]
      %v785 = vld [vmem:[%s5 + $0xb8] sm:$0xff]
      %v786 = vld [vmem:[%s5 + $0xc0] sm:$0xff]
      %v787 = vld [vmem:[%s5 + $0xc8] sm:$0xff]
      %v788 = vld [vmem:[%s5 + $0xd0] sm:$0xff]
      %v789 = vld [vmem:[%s5 + $0xd8] sm:$0xff]
      %v790 = vld [vmem:[%s5 + $0xe0] sm:$0xff]
      %v791 = vld [vmem:[%s5 + $0xe8] sm:$0xff]
      %v792 = vld [vmem:[%s5 + $0xf0] sm:$0xff]
      %v793 = vld [vmem:[%s5 + $0xf8] sm:$0xff]
      %794 = vmatprep.subr.mxu0 0.0
      %795 = vmatpush1.msra.mxu0 %v777
      %796 = vmatprep.subr.mxu0 0.0
      %797 = vmatpush1.msra.mxu0 %v776
      %798 = vmatprep.subr.mxu0 0.0
      %799 = vmatpush1.msra.mxu0 %v775
      %800 = vmatprep.subr.mxu0 0.0
      %801 = vmatpush1.msra.mxu0 %v774
      %802 = vmatprep.subr.mxu0 0.0
      %803 = vmatpush1.msra.mxu0 %v773
      %804 = vmatprep.subr.mxu0 0.0
      %805 = vmatpush1.msra.mxu0 %v772
      %806 = vmatprep.subr.mxu0 0.0
      %807 = vmatpush1.msra.mxu0 %v771
      %808 = vmatprep.subr.mxu0 0.0
      %809 = vmatpush1.msra.mxu0 %v770
      %810 = vmatprep.subr.mxu0 0.0
      %811 = vmatpush1.msra.mxu0 %v769
      %812 = vmatprep.subr.mxu0 0.0
      %813 = vmatpush1.msra.mxu0 %v768
      %814 = vmatprep.subr.mxu0 0.0
      %815 = vmatpush1.msra.mxu0 %v767
      %816 = vmatprep.subr.mxu0 0.0
      %817 = vmatpush1.msra.mxu0 %v766
      %818 = vmatprep.subr.mxu0 0.0
      %819 = vmatpush1.msra.mxu0 %v765
      %820 = vmatprep.subr.mxu0 0.0
      %821 = vmatpush1.msra.mxu0 %v764
      %822 = vmatprep.subr.mxu0 0.0
      %823 = vmatpush1.msra.mxu0 %v763
      %824 = vmatprep.subr.mxu0 0.0
      %825 = vmatpush1.msra.mxu0 %v762
      %826 = vmatprep.subr.mxu0 0.0
      %827 = vmatpush2.msra.mxu0 %v793
      %828 = vmatprep.subr.mxu0 0.0
      %829 = vmatpush2.msra.mxu0 %v792
      %830 = vmatprep.subr.mxu0 0.0
      %831 = vmatpush2.msra.mxu0 %v791
      %832 = vmatprep.subr.mxu0 0.0
      %833 = vmatpush2.msra.mxu0 %v790
      %834 = vmatprep.subr.mxu0 0.0
      %835 = vmatpush2.msra.mxu0 %v789
      %836 = vmatprep.subr.mxu0 0.0
      %837 = vmatpush2.msra.mxu0 %v788
      %838 = vmatprep.subr.mxu0 0.0
      %839 = vmatpush2.msra.mxu0 %v787
      %840 = vmatprep.subr.mxu0 0.0
      %841 = vmatpush2.msra.mxu0 %v786
      %842 = vmatprep.subr.mxu0 0.0
      %843 = vmatpush2.msra.mxu0 %v785
      %844 = vmatprep.subr.mxu0 0.0
      %845 = vmatpush2.msra.mxu0 %v784
      %846 = vmatprep.subr.mxu0 0.0
      %847 = vmatpush2.msra.mxu0 %v783
      %848 = vmatprep.subr.mxu0 0.0
      %849 = vmatpush2.msra.mxu0 %v782
      %850 = vmatprep.subr.mxu0 0.0
      %851 = vmatpush2.msra.mxu0 %v781
      %852 = vmatprep.subr.mxu0 0.0
      %853 = vmatpush2.msra.mxu0 %v780
      %854 = vmatprep.subr.mxu0 0.0
      %855 = vmatpush2.msra.mxu0 %v779
      %856 = vmatprep.subr.mxu0 0.0
      %857 = vmatpush2.msra.mxu0 %v778
      %858 = vmatprep.mubr.f32.mxu0 %v759
      %859 = vmatmul.mubr.f32.gmra.mxu0 %v758
      %v860 = vpop.f32.mrf.mxu0
      %v861 = vadd.f32 0.0, %v860
      %v862 = vpop.f32.mrf.mxu0
      %863 = vmatprep.mubr.f32.mxu0 %v761
      %864 = vmatmul.mubr.f32.gmra.mxu0 %v760
      %v865 = vpop.f32.mrf.mxu0
      %v866 = vadd.f32 0.0, %v865
      %v867 = vpop.f32.mrf.mxu0
      %868 = vdwg.mxu0
      %v869 = vadd.f32 %v580, %v861
      %v870 = vadd.f32 %v585, %v866
      %v871 = vmax.f32 %v869, 0.0
      %v872 = vmax.f32 %v870, 0.0
      %v873 = vld [vmem:[%s8] sm:$0xff]
      %v874 = vld [vmem:[%s8 + $0x8] sm:$0xff]
      %v875 = vld [vmem:[%s8 + $0x10] sm:$0xff]
      %v876 = vld [vmem:[%s8 + $0x18] sm:$0xff]
      %v877 = vld [vmem:[%s9] sm:$0xff]
      %v878 = vld [vmem:[%s9 + $0x8] sm:$0xff]
      %v879 = vld [vmem:[%s9 + $0x10] sm:$0xff]
      %v880 = vld [vmem:[%s9 + $0x18] sm:$0xff]
      %881 = vmatprep.subr.mxu0 0.0
      %882 = vmatpush1.msra.mxu0 0.0
      %883 = vmatprep.subr.mxu0 0.0
      %884 = vmatpush1.msra.mxu0 0.0
      %885 = vmatprep.subr.mxu0 0.0
      %886 = vmatpush1.msra.mxu0 0.0
      %887 = vmatprep.subr.mxu0 0.0
      %888 = vmatpush1.msra.mxu0 0.0
      %889 = vmatprep.subr.mxu0 0.0
      %890 = vmatpush1.msra.mxu0 0.0
      %891 = vmatprep.subr.mxu0 0.0
      %892 = vmatpush1.msra.mxu0 0.0
      %893 = vmatprep.subr.mxu0 0.0
      %894 = vmatpush1.msra.mxu0 0.0
      %895 = vmatprep.subr.mxu0 0.0
      %896 = vmatpush1.msra.mxu0 0.0
      %897 = vmatprep.subr.mxu0 0.0
      %898 = vmatpush1.msra.mxu0 0.0
      %899 = vmatprep.subr.mxu0 0.0
      %900 = vmatpush1.msra.mxu0 0.0
      %901 = vmatprep.subr.mxu0 0.0
      %902 = vmatpush1.msra.mxu0 0.0
      %903 = vmatprep.subr.mxu0 0.0
      %904 = vmatpush1.msra.mxu0 0.0
      %905 = vmatprep.subr.mxu0 0.0
      %906 = vmatpush1.msra.mxu0 %v880
      %907 = vmatprep.subr.mxu0 0.0
      %908 = vmatpush1.msra.mxu0 %v879
      %909 = vmatprep.subr.mxu0 0.0
      %910 = vmatpush1.msra.mxu0 %v878
      %911 = vmatprep.subr.mxu0 0.0
      %912 = vmatpush1.msra.mxu0 %v877
      %913 = vmatprep.subr.mxu0 0.0
      %914 = vmatpush2.msra.mxu0 0.0
      %915 = vmatprep.subr.mxu0 0.0
      %916 = vmatpush2.msra.mxu0 0.0
      %917 = vmatprep.subr.mxu0 0.0
      %918 = vmatpush2.msra.mxu0 0.0
      %919 = vmatprep.subr.mxu0 0.0
      %920 = vmatpush2.msra.mxu0 0.0
      %921 = vmatprep.subr.mxu0 0.0
      %922 = vmatpush2.msra.mxu0 0.0
      %923 = vmatprep.subr.mxu0 0.0
      %924 = vmatpush2.msra.mxu0 0.0
      %925 = vmatprep.subr.mxu0 0.0
      %926 = vmatpush2.msra.mxu0 0.0
      %927 = vmatprep.subr.mxu0 0.0
      %928 = vmatpush2.msra.mxu0 0.0
      %929 = vmatprep.subr.mxu0 0.0
      %930 = vmatpush2.msra.mxu0 0.0
      %931 = vmatprep.subr.mxu0 0.0
      %932 = vmatpush2.msra.mxu0 0.0
      %933 = vmatprep.subr.mxu0 0.0
      %934 = vmatpush2.msra.mxu0 0.0
      %935 = vmatprep.subr.mxu0 0.0
      %936 = vmatpush2.msra.mxu0 0.0
      %937 = vmatprep.subr.mxu0 0.0
      %938 = vmatpush2.msra.mxu0 0.0
      %939 = vmatprep.subr.mxu0 0.0
      %940 = vmatpush2.msra.mxu0 0.0
      %941 = vmatprep.subr.mxu0 0.0
      %942 = vmatpush2.msra.mxu0 0.0
      %943 = vmatprep.subr.mxu0 0.0
      %944 = vmatpush2.msra.mxu0 0.0
      %945 = vmatprep.mubr.f32.mxu0 0.0
      %946 = vmatmul.mubr.f32.gmra.mxu0 %v508
      %v947 = vpop.f32.mrf.mxu0
      %v948 = vadd.f32 0.0, %v947
      %v949 = vpop.f32.mrf.mxu0
      %950 = vmatprep.mubr.f32.mxu0 0.0
      %951 = vmatmul.mubr.f32.gmra.mxu0 %v511
      %v952 = vpop.f32.mrf.mxu0
      %v953 = vadd.f32 0.0, %v952
      %v954 = vpop.f32.mrf.mxu0
      %955 = vdwg.mxu0
      %v957 = vsel %vm506, %v871, 0
      %v960 = vsel %vm506, %v872, 0
      %962 = vmatprep.subr.mxu0 0.0
      %963 = vmatpush1.msra.mxu0 0.0
      %964 = vmatprep.subr.mxu0 0.0
      %965 = vmatpush1.msra.mxu0 0.0
      %966 = vmatprep.subr.mxu0 0.0
      %967 = vmatpush1.msra.mxu0 0.0
      %968 = vmatprep.subr.mxu0 0.0
      %969 = vmatpush1.msra.mxu0 0.0
      %970 = vmatprep.subr.mxu0 0.0
      %971 = vmatpush1.msra.mxu0 0.0
      %972 = vmatprep.subr.mxu0 0.0
      %973 = vmatpush1.msra.mxu0 0.0
      %974 = vmatprep.subr.mxu0 0.0
      %975 = vmatpush1.msra.mxu0 0.0
      %976 = vmatprep.subr.mxu0 0.0
      %977 = vmatpush1.msra.mxu0 0.0
      %978 = vmatprep.subr.mxu0 0.0
      %979 = vmatpush1.msra.mxu0 0.0
      %980 = vmatprep.subr.mxu0 0.0
      %981 = vmatpush1.msra.mxu0 0.0
      %982 = vmatprep.subr.mxu0 0.0
      %983 = vmatpush1.msra.mxu0 0.0
      %984 = vmatprep.subr.mxu0 0.0
      %985 = vmatpush1.msra.mxu0 0.0
      %986 = vmatprep.subr.mxu0 0.0
      %987 = vmatpush1.msra.mxu0 %v876
      %988 = vmatprep.subr.mxu0 0.0
      %989 = vmatpush1.msra.mxu0 %v875
      %990 = vmatprep.subr.mxu0 0.0
      %991 = vmatpush1.msra.mxu0 %v874
      %992 = vmatprep.subr.mxu0 0.0
      %993 = vmatpush1.msra.mxu0 %v873
      %994 = vmatprep.subr.mxu0 0.0
      %995 = vmatpush2.msra.mxu0 0.0
      %996 = vmatprep.subr.mxu0 0.0
      %997 = vmatpush2.msra.mxu0 0.0
      %998 = vmatprep.subr.mxu0 0.0
      %999 = vmatpush2.msra.mxu0 0.0
      %1000 = vmatprep.subr.mxu0 0.0
      %1001 = vmatpush2.msra.mxu0 0.0
      %1002 = vmatprep.subr.mxu0 0.0
      %1003 = vmatpush2.msra.mxu0 0.0
      %1004 = vmatprep.subr.mxu0 0.0
      %1005 = vmatpush2.msra.mxu0 0.0
      %1006 = vmatprep.subr.mxu0 0.0
      %1007 = vmatpush2.msra.mxu0 0.0
      %1008 = vmatprep.subr.mxu0 0.0
      %1009 = vmatpush2.msra.mxu0 0.0
      %1010 = vmatprep.subr.mxu0 0.0
      %1011 = vmatpush2.msra.mxu0 0.0
      %1012 = vmatprep.subr.mxu0 0.0
      %1013 = vmatpush2.msra.mxu0 0.0
      %1014 = vmatprep.subr.mxu0 0.0
      %1015 = vmatpush2.msra.mxu0 0.0
      %1016 = vmatprep.subr.mxu0 0.0
      %1017 = vmatpush2.msra.mxu0 0.0
      %1018 = vmatprep.subr.mxu0 0.0
      %1019 = vmatpush2.msra.mxu0 0.0
      %1020 = vmatprep.subr.mxu0 0.0
      %1021 = vmatpush2.msra.mxu0 0.0
      %1022 = vmatprep.subr.mxu0 0.0
      %1023 = vmatpush2.msra.mxu0 0.0
      %1024 = vmatprep.subr.mxu0 0.0
      %1025 = vmatpush2.msra.mxu0 0.0
      %1026 = vmatprep.mubr.f32.mxu0 0.0
      %1027 = vmatmul.mubr.f32.gmra.mxu0 %v957
      %v1028 = vpop.f32.mrf.mxu0
      %v1029 = vadd.f32 %v948, %v1028
      %v1030 = vpop.f32.mrf.mxu0
      %1031 = vmatprep.mubr.f32.mxu0 0.0
      %1032 = vmatmul.mubr.f32.gmra.mxu0 %v960
      %v1033 = vpop.f32.mrf.mxu0
      %v1034 = vadd.f32 %v953, %v1033
      %v1035 = vpop.f32.mrf.mxu0
      %1036 = vdwg.mxu0
      %v1037 = vld [vmem:[%s10] sm:$0x1]
      %v1039 = vlaneseq
      %v1040 = vshrl.u32 %v1039, 7
      %v1041 = vsub.s32 0, %v1040
      %v1042 = vrot.slane %v1037, %v1041
      %v1044 = vadd.f32 %v1029, %v1042
      %v1045 = vadd.f32 %v1034, %v1042
      %1046 = vst [vmem:[%s388] sm:$0xff] %v1044
      %1047 = vst [vmem:[%s388 + $0x8] sm:$0xff] %v1045
      %s1048 = smul.u32 2, %s22
      %p1049 = scmp.lt.s32.totalorder %s1048, 3
      %s1050 = scalar_select %p1049, %s1048, 3
      %s1051 = smul.addr %s1050, 8
      %s1052 = scalar_lea.vmem %s11, %s1051
      // Predicated region
      $region65: #{rec_system_code_concatenation.1} parent=63 // pred_check
        %p1053 = pneg %p276
      $region66: #{rec_system_code_concatenation.1} parent=63 // pred_check_branch
        %1055 = sbr.rel (%p1053) target = $region68
      $region67: #{rec_system_code_concatenation.1} parent=63 // pred_region
        %s1056 = smul.u32 2, %s22
      $region68: #{rec_system_code_concatenation.1} parent=63 // pred_fallthru
        _
    $region64: #{rec_system_code_concatenation.1} parent=5 // pred_fallthru
      _
    %p1057 = scmp.le.s32.totalorder 2, %s17
    // Predicated region
    $region69: #{rec_system_code_concatenation.1} parent=5 // pred_check
      %p1058 = pneg %p1057
    $region70: #{rec_system_code_concatenation.1} parent=5 // pred_check_branch
      %1060 = sbr.rel (%p1058) target = $region72
    $region71: #{rec_system_code_concatenation.1} parent=5 // pred_region
      %s1061 = ssub.s32 %s17, 2
      // Predicated region
      $region73: #{rec_system_code_concatenation.1} parent=71 // pred_check
        %p1062 = pneg %p282
      $region74: #{rec_system_code_concatenation.1} parent=71 // pred_check_branch
        %1064 = sbr.rel (%p1062) target = $region76
      $region75: #{rec_system_code_concatenation.1} parent=71 // pred_region
        %s1065 = smul.u32 2, %s23
        %p1066 = scmp.lt.s32.totalorder %s1065, 3
        %s1067 = scalar_select %p1066, %s1065, 3
        %s1068 = smul.addr %s1067, 8
        %s1069 = scalar_lea.vmem %s11, %s1068
      $region76: #{rec_system_code_concatenation.1} parent=71 // pred_fallthru
        _
    $region72: #{rec_system_code_concatenation.1} parent=5 // pred_fallthru
      _
  $region6: #{rec_system_code_concatenation.1} parent=0 // loop_footer
    %s21 = sadd.s32 1, %s17
  $region7: #{rec_system_code_concatenation.1} parent=0 // loop_footer_branch
    %16 = sbr.rel target = $region3
  $region8: #{rec_system_code_concatenation.1} parent=0 // loop_exit
    _

</llo_original>
